<compile_context>
chip_gen: v6e
topology: v6e:2x2x1
jax: 0.10.0
libtpu: 0.0.40
codegen_flags: <defaults>
</compile_context>

<pallas_src>
import functools

import jax
import jax.numpy as jnp
from jax.experimental import pallas as pl
from jax.experimental.pallas import tpu as pltpu


def _lwconv_kernel(w_ref, b_ref, x_ref, o_ref, xp_ref, *, k_size, pad):
    # w_ref : (TR, K)        softmax-normalized taps, one row per (batch, chan)
    # b_ref : (TR, 1)        bias per row
    # x_ref : (TR, L)        input tile (rows on sublanes, length on lanes)
    # o_ref : (TR, L)        output tile
    # xp_ref: (TR, L + 2p)   f32 VMEM scratch = [0]*pad ++ x ++ [0]*pad
    rows, length = o_ref.shape

    if pad > 0:  # static Python branch
        zeros_halo = jnp.zeros((rows, pad), xp_ref.dtype)
        xp_ref[:, 0:pad] = zeros_halo
        xp_ref[:, pad + length:length + 2 * pad] = zeros_halo
    xp_ref[:, pad:pad + length] = x_ref[...].astype(xp_ref.dtype)

    w = w_ref[...].astype(jnp.float32)           # (TR, K), already softmaxed
    xp = xp_ref[...]                             # (TR, L + 2*pad) f32

    acc = jnp.zeros((rows, length), jnp.float32)
    # depthwise cross-correlation: out[r, t] = sum_k w[r, k] * xp[r, t + k]
    for k in range(k_size):                      # K is small & static -> unrolled
        acc = acc + w[:, k:k + 1] * xp[:, k:k + length]

    acc = acc + b_ref[...].astype(jnp.float32)
    o_ref[...] = acc.astype(o_ref.dtype)


def _pick_row_tile(rows, length, elem_bytes=4, target_bytes=4 << 20):
    # Largest row tile that (a) divides `rows`, (b) is a multiple of 8 (the
    # (8,128) sublane rule), and (c) keeps one (tile, length) f32 block around
    # a few MiB so in/out double-buffers + scratch stay well under the
    # smallest per-core VMEM (v7x: 64 MiB).
    max_rows = max(8, target_bytes // max(1, length * elem_bytes))
    for cand in (8192, 4096, 2048, 1024, 512, 256, 128, 64, 32, 16, 8):
        if cand <= max_rows and rows % cand == 0:
            return cand
    return rows  # small / odd row counts: a single block == the full array


@functools.partial(jax.jit, static_argnums=(3, 4))
def lightweight_conv1d(x, w, bias, shared, padding):
    """Forward pass matching the PyTorch LightweightConv1d.

    x:    (b, c, l)
    w:    (out_channels // shared, 1, kernel)  raw taps (softmax applied here)
    bias: (out_channels // 2,)  -- the PyTorch module is only shape-consistent
                                   for shared == 2 and out_channels == in_channels.
    """
    b, c, l = x.shape
    c2 = c // shared
    k = w.shape[-1]
    b2 = b * shared
    rows = b2 * c2               # == b * c

    # Hoisted softmax (once, tiny) + replicate weight/bias per flattened
    # (batch*channel) row so the kernel is a pure depthwise MAC.
    w_sm = jax.nn.softmax(w.reshape(c2, k).astype(jnp.float32), axis=-1)
    w_rows = jnp.tile(w_sm, (b2, 1))                                  # (rows, K)
    bias_rows = jnp.tile(bias.reshape(c2, 1).astype(jnp.float32), (b2, 1))

    x2 = x.reshape(rows, l)      # contiguous reshape: no data movement

    tr = _pick_row_tile(rows, l)
    grid = (rows // tr,)

    out = pl.pallas_call(
        functools.partial(_lwconv_kernel, k_size=k, pad=padding),
        out_shape=jax.ShapeDtypeStruct((rows, l), x.dtype),
        grid_spec=pltpu.PrefetchScalarGridSpec(
            num_scalar_prefetch=0,
            grid=grid,
            in_specs=[
                pl.BlockSpec((tr, k), lambda i: (i, 0)),
                pl.BlockSpec((tr, 1), lambda i: (i, 0)),
                pl.BlockSpec((tr, l), lambda i: (i, 0)),
            ],
            out_specs=pl.BlockSpec((tr, l), lambda i: (i, 0)),
            scratch_shapes=[pltpu.VMEM((tr, l + 2 * padding), jnp.float32)],
        ),
        compiler_params=pltpu.CompilerParams(
            dimension_semantics=("parallel",),
            vmem_limit_bytes=64 * 1024 * 1024,
        ),
    )(w_rows, bias_rows, x2)

    return out.reshape(b, c, l)


def _reference(x, w, bias, shared, padding):
    # Pure-JAX reference of the PyTorch forward.
    b, c, l = x.shape
    c2 = c // shared
    k = w.shape[-1]
    w_sm = jax.nn.softmax(w.reshape(c2, k), axis=-1)
    x_r = x.reshape(b * shared, c2, l)
    x_pad = jnp.pad(x_r, ((0, 0), (0, 0), (padding, padding)))
    out = jnp.zeros((b * shared, c2, l), jnp.float32)
    for kk in range(k):
        out = out + w_sm[None, :, kk:kk + 1] * x_pad[:, :, kk:kk + l]
    out = out + bias.reshape(1, c2, 1)
    return out.reshape(b, c, l)


if __name__ == "__main__":
    # Module hyperparameters (the PyTorch module itself is only runnable with
    # shared=2, out_channels == in_channels, and 'same' padding).
    in_channels = 8
    out_channels = 8
    shared = 2
    kernel = 3
    padding = 1

    batch, length = 2, 16

    key = jax.random.PRNGKey(0)
    kx, kw = jax.random.split(key)
    x = jax.random.normal(kx, (batch, in_channels, length), dtype=jnp.float32)
    # torch.rand -> uniform [0, 1)
    w = jax.random.uniform(kw, (out_channels // shared, 1, kernel),
                           dtype=jnp.float32)
    bias = jnp.zeros((out_channels // 2,), dtype=jnp.float32)

    y = lightweight_conv1d(x, w, bias, shared, padding)
    y = jax.block_until_ready(y)

    y_ref = _reference(x, w, bias, shared, padding)
    assert y.shape == (batch, in_channels, length)
    assert jnp.allclose(y, y_ref, atol=1e-5, rtol=1e-5)

    print("KERNEL_OK")
</pallas_src>

<mosaic_0001>
module attributes {stable_mosaic.version = 11 : i64} {
  func.func @_lwconv_kernel(%arg0: i32, %arg1: memref<16x3xf32, #tpu.memory_space<vmem>>, %arg2: memref<16x1xf32, #tpu.memory_space<vmem>>, %arg3: memref<16x16xf32, #tpu.memory_space<vmem>>, %arg4: memref<16x16xf32, #tpu.memory_space<vmem>>, %arg5: memref<16x18xf32, #tpu.memory_space<vmem>>) attributes {dimension_semantics = [#tpu.dimension_semantics<parallel>], iteration_bounds = array<i64: 1>, scalar_prefetch = 0 : i64, scratch_operands = 1 : i64, tpu.core_type = #tpu.core_type<tc>, window_params = [{transform_indices = @transform_0, window_bounds = array<i64: 16, 3>}, {transform_indices = @transform_1, window_bounds = array<i64: 16, 1>}, {transform_indices = @transform_2, window_bounds = array<i64: 16, 16>}, {transform_indices = @transform_3, window_bounds = array<i64: 16, 16>}]} {
    %cst = arith.constant 0.000000e+00 : f32
    %0 = vector.broadcast %cst : f32 to vector<16x1xf32>
    %c0 = arith.constant 0 : index
    %c0_0 = arith.constant 0 : index
    %1 = vector.load %arg5[%c0, %c0_0] : memref<16x18xf32, #tpu.memory_space<vmem>>, vector<16x1xf32>
    tpu.vector_store %arg5[%c0, %c0_0], %0 {strides = array<i32>} : memref<16x18xf32, #tpu.memory_space<vmem>>, vector<16x1xf32>,
    %c0_1 = arith.constant 0 : index
    %c17 = arith.constant 17 : index
    %2 = vector.load %arg5[%c0_1, %c17] : memref<16x18xf32, #tpu.memory_space<vmem>>, vector<16x1xf32>
    tpu.vector_store %arg5[%c0_1, %c17], %0 {strides = array<i32>} : memref<16x18xf32, #tpu.memory_space<vmem>>, vector<16x1xf32>,
    %c0_2 = arith.constant 0 : index
    %c0_3 = arith.constant 0 : index
    %3 = vector.load %arg3[%c0_2, %c0_3] : memref<16x16xf32, #tpu.memory_space<vmem>>, vector<16x16xf32>
    %c0_4 = arith.constant 0 : index
    %c1 = arith.constant 1 : index
    %4 = vector.load %arg5[%c0_4, %c1] : memref<16x18xf32, #tpu.memory_space<vmem>>, vector<16x16xf32>
    tpu.vector_store %arg5[%c0_4, %c1], %3 {strides = array<i32>} : memref<16x18xf32, #tpu.memory_space<vmem>>, vector<16x16xf32>,
    %c0_5 = arith.constant 0 : index
    %c0_6 = arith.constant 0 : index
    %5 = vector.load %arg1[%c0_5, %c0_6] : memref<16x3xf32, #tpu.memory_space<vmem>>, vector<16x3xf32>
    %c0_7 = arith.constant 0 : index
    %c0_8 = arith.constant 0 : index
    %6 = vector.load %arg5[%c0_7, %c0_8] : memref<16x18xf32, #tpu.memory_space<vmem>>, vector<16x18xf32>
    %cst_9 = arith.constant 0.000000e+00 : f32
    %7 = vector.broadcast %cst_9 : f32 to vector<16x16xf32>
    %8 = vector.extract_strided_slice %5 {offsets = [0, 0], sizes = [16, 1], strides = [1, 1]} : vector<16x3xf32> to vector<16x1xf32>
    %9 = vector.extract_strided_slice %6 {offsets = [0, 0], sizes = [16, 16], strides = [1, 1]} : vector<16x18xf32> to vector<16x16xf32>
    %10 = vector.broadcast %8 : vector<16x1xf32> to vector<16x16xf32>
    %11 = arith.mulf %10, %9 : vector<16x16xf32>
    %12 = arith.addf %7, %11 : vector<16x16xf32>
    %13 = vector.extract_strided_slice %5 {offsets = [0, 1], sizes = [16, 1], strides = [1, 1]} : vector<16x3xf32> to vector<16x1xf32>
    %14 = vector.extract_strided_slice %6 {offsets = [0, 1], sizes = [16, 16], strides = [1, 1]} : vector<16x18xf32> to vector<16x16xf32>
    %15 = vector.broadcast %13 : vector<16x1xf32> to vector<16x16xf32>
    %16 = arith.mulf %15, %14 : vector<16x16xf32>
    %17 = arith.addf %12, %16 : vector<16x16xf32>
    %18 = vector.extract_strided_slice %5 {offsets = [0, 2], sizes = [16, 1], strides = [1, 1]} : vector<16x3xf32> to vector<16x1xf32>
    %19 = vector.extract_strided_slice %6 {offsets = [0, 2], sizes = [16, 16], strides = [1, 1]} : vector<16x18xf32> to vector<16x16xf32>
    %20 = vector.broadcast %18 : vector<16x1xf32> to vector<16x16xf32>
    %21 = arith.mulf %20, %19 : vector<16x16xf32>
    %22 = arith.addf %17, %21 : vector<16x16xf32>
    %c0_10 = arith.constant 0 : index
    %c0_11 = arith.constant 0 : index
    %23 = vector.load %arg2[%c0_10, %c0_11] : memref<16x1xf32, #tpu.memory_space<vmem>>, vector<16x1xf32>
    %24 = vector.broadcast %23 : vector<16x1xf32> to vector<16x16xf32>
    %25 = arith.addf %22, %24 : vector<16x16xf32>
    %c0_12 = arith.constant 0 : index
    %c0_13 = arith.constant 0 : index
    %26 = vector.load %arg4[%c0_12, %c0_13] : memref<16x16xf32, #tpu.memory_space<vmem>>, vector<16x16xf32>
    tpu.vector_store %arg4[%c0_12, %c0_13], %25 {strides = array<i32>} : memref<16x16xf32, #tpu.memory_space<vmem>>, vector<16x16xf32>,
    return
  }
  func.func @transform_0(%arg0: i32) -> (i32, i32) {
    %c0_i32 = arith.constant 0 : i32
    %c0_i32_0 = arith.constant 0 : i32
    return %arg0, %c0_i32 : i32, i32
  }
  func.func @transform_1(%arg0: i32) -> (i32, i32) {
    %c0_i32 = arith.constant 0 : i32
    %c0_i32_0 = arith.constant 0 : i32
    return %arg0, %c0_i32 : i32, i32
  }
  func.func @transform_2(%arg0: i32) -> (i32, i32) {
    %c0_i32 = arith.constant 0 : i32
    %c0_i32_0 = arith.constant 0 : i32
    return %arg0, %c0_i32 : i32, i32
  }
  func.func @transform_3(%arg0: i32) -> (i32, i32) {
    %c0_i32 = arith.constant 0 : i32
    %c0_i32_0 = arith.constant 0 : i32
    return %arg0, %c0_i32 : i32, i32
  }
}

</mosaic_0001>

<llo_original>
// kernel: lightweight_conv1d.1
$region0: #{lightweight_conv1d.1}
  #allocation0 [shape = 'u32[]', space=smem, size = 0x4, offset = 0x4, fixed_abs, tag = 'smem constant byte address 0x4 - core index']
  #allocation1 [shape = 'u32[144,128]{1,0:T(1,128)}', space=vmem, size = 0x12000, scoped, tag = 'internal scratch']
  #allocation2 [shape = 'f32[16,18]{1,0:T(8,128)}', space=vmem, size = 0x2000, scoped, tag = 'scratch operand']
  %s0 = inlined_call_operand.vmem [shape: f32[16,3], index: 0, kind: input, shape index: {}]
  %s1 = inlined_call_operand.vmem [shape: f32[16,1], index: 1, kind: input, shape index: {}]
  %s2 = inlined_call_operand.vmem [shape: f32[16,16], index: 2, kind: input, shape index: {}]
  %s3 = inlined_call_operand.hbm [shape: f32[16,16], index: 3, kind: output, shape index: {}]
  %s4 = sld [smem:[#allocation0]]
  $region22: #{lightweight_conv1d.1} parent=0
    _
  %s6 = ssub.s32 1, %s4
  %s7 = scalar_select 0, %s6, %s4
  $region1: #{lightweight_conv1d.1} parent=0
    #allocation3 [shape = 'u8[8192]{0}', space=vmem, size = 0x2000, scoped, tag = 'output window, operand 0, single buffered']
    #allocation4 [shape = 's32[1]{0}', space=sflag, size = 0x4, scoped, tag = 'scoped memory for lightweight_conv1d.1']
    %8 = vsyncpa [#allocation4], 0
    // Predicated region
    $region2: #{lightweight_conv1d.1} parent=1 // pred_check
      _
    $region3: #{lightweight_conv1d.1} parent=1 // pred_check_branch
      %10 = sbr.rel (0) target = $region5
    $region4: #{lightweight_conv1d.1} parent=1 // pred_region
      _
    $region5: #{lightweight_conv1d.1} parent=1 // pred_fallthru
      _
    // Predicated region
    $region6: #{lightweight_conv1d.1} parent=1 // pred_check
      _
    $region7: #{lightweight_conv1d.1} parent=1 // pred_check_branch
      %12 = sbr.rel (0) target = $region9
    $region8: #{lightweight_conv1d.1} parent=1 // pred_region
      _
    $region9: #{lightweight_conv1d.1} parent=1 // pred_fallthru
      _
    // Predicated region
    $region10: #{lightweight_conv1d.1} parent=1 // pred_check
      _
    $region11: #{lightweight_conv1d.1} parent=1 // pred_check_branch
      %14 = sbr.rel (0) target = $region13
    $region12: #{lightweight_conv1d.1} parent=1 // pred_region
      _
    $region13: #{lightweight_conv1d.1} parent=1 // pred_fallthru
      _
    %vm15 = vcmask 7168
    %16 = vst.msk [vmem:[#allocation2] sm:$0xff] %vm15, 0.0
    %17 = vst.msk [vmem:[#allocation2 + $0x8] sm:$0xff] %vm15, 0.0
    %vm18 = vcmask 146568
    %19 = vst.msk [vmem:[#allocation2] sm:$0xff] %vm18, 0.0
    %20 = vst.msk [vmem:[#allocation2 + $0x8] sm:$0xff] %vm18, 0.0
    %v21 = vld [vmem:[%s2] sm:$0xff]
    %v22 = vld [vmem:[%s2 + $0x8] sm:$0xff]
    %25 = vrot.lane.b32.xlu0 %v21, 1
    %v26 = vpop.permute.xlu0 %25
    %27 = vrot.lane.b32.xlu0 %v22, 1
    %v28 = vpop.permute.xlu0 %27
    %vm31 = vcmask 138248
    %32 = vst.msk [vmem:[#allocation2] sm:$0xff] %vm31, %v26
    %33 = vst.msk [vmem:[#allocation2 + $0x8] sm:$0xff] %vm31, %v28
    %v34 = vld [vmem:[%s0] sm:$0xff]
    %v35 = vld [vmem:[%s0 + $0x8] sm:$0xff]
    %v36 = vld [vmem:[#allocation2] sm:$0xff]
    %v37 = vld [vmem:[#allocation2 + $0x8] sm:$0xff]
    %39 = vset.pattern.permute.xlu0 0
    %40 = vperm.xlu0 %39, %v34
    %v41 = vpop.permute.xlu0 %40
    %44 = vset.pattern.permute.xlu0 0
    %45 = vperm.xlu0 %44, %v35
    %v46 = vpop.permute.xlu0 %45
    %v48 = vmul.f32 %v41, %v36
    %v49 = vmul.f32 %v46, %v37
    %v50 = vadd.f32 %v48, 0.0
    %v51 = vadd.f32 %v49, 0.0
    %52 = vset.pattern.permute.xlu0 1
    %53 = vperm.xlu0 %52, %v34
    %v54 = vpop.permute.xlu0 %53
    %56 = vset.pattern.permute.xlu0 1
    %57 = vperm.xlu0 %56, %v35
    %v58 = vpop.permute.xlu0 %57
    %v60 = vmul.f32 %v54, %v36
    %v61 = vmul.f32 %v58, %v37
    %64 = vrot.lane.b32.xlu0 %v60, 127
    %v65 = vpop.permute.xlu0 %64
    %66 = vrot.lane.b32.xlu0 %v61, 127
    %v67 = vpop.permute.xlu0 %66
    %v70 = vadd.f32 %v50, %v65
    %v71 = vadd.f32 %v51, %v67
    %72 = vset.pattern.permute.xlu0 2
    %73 = vperm.xlu0 %72, %v34
    %v74 = vpop.permute.xlu0 %73
    %76 = vset.pattern.permute.xlu0 2
    %77 = vperm.xlu0 %76, %v35
    %v78 = vpop.permute.xlu0 %77
    %v80 = vmul.f32 %v74, %v36
    %v81 = vmul.f32 %v78, %v37
    %84 = vrot.lane.b32.xlu0 %v80, 126
    %v85 = vpop.permute.xlu0 %84
    %86 = vrot.lane.b32.xlu0 %v81, 126
    %v87 = vpop.permute.xlu0 %86
    %v90 = vadd.f32 %v70, %v85
    %v91 = vadd.f32 %v71, %v87
    %v92 = vld [vmem:[%s1] sm:$0xff]
    %v93 = vld [vmem:[%s1 + $0x8] sm:$0xff]
    %95 = vset.pattern.permute.xlu0 0
    %96 = vperm.xlu0 %95, %v92
    %v97 = vpop.permute.xlu0 %96
    %100 = vset.pattern.permute.xlu0 0
    %101 = vperm.xlu0 %100, %v93
    %v102 = vpop.permute.xlu0 %101
    %v104 = vadd.f32 %v90, %v97
    %v105 = vadd.f32 %v91, %v102
    %vm106 = vcmask 130048
    %107 = vst.msk [vmem:[#allocation3] sm:$0xff] %vm106, %v104
    %108 = vst.msk [vmem:[#allocation3 + $0x8] sm:$0xff] %vm106, %v105
    // Predicated region
    $region14: #{lightweight_conv1d.1} parent=1 // pred_check
      _
    $region15: #{lightweight_conv1d.1} parent=1 // pred_check_branch
      %110 = sbr.rel (0) target = $region17
    $region16: #{lightweight_conv1d.1} parent=1 // pred_region
      %s112 = ssub.s32 256, 256
      %113 = vsyncadd [#allocation4], %s112
      %s114 = sshll.u32 [#allocation3], 4
      %s115 = int_to_ptr.vmem [resolvable:$true] %s114
      %120 = dma.vmem_to_hbm [thread:$0]  %s115, 256, %s3, [#allocation4], 128, 128, 8
    $region17: #{lightweight_conv1d.1} parent=1 // pred_fallthru
      _
    // Predicated region
    $region18: #{lightweight_conv1d.1} parent=1 // pred_check
      _
    $region19: #{lightweight_conv1d.1} parent=1 // pred_check_branch
      %122 = sbr.rel (0) target = $region21
    $region20: #{lightweight_conv1d.1} parent=1 // pred_region
      %123 = dma.done [#allocation4], 256
    $region21: #{lightweight_conv1d.1} parent=1 // pred_fallthru
      _
    %124 = vsyncpa [#allocation4], 1

</llo_original>
